<compile_context>
chip_gen: v6e
topology: v6e:2x2x1
jax: 0.10.0
libtpu: 0.0.40
codegen_flags: <defaults>
</compile_context>

<pallas_src>
import functools

import jax
import jax.numpy as jnp
from jax.experimental import pallas as pl
from jax.experimental.pallas import tpu as pltpu

# MLP layer widths, matching the PyTorch module.
LAYER_DIMS = [3, 9, 27, 50, 27, 9, 3]
NUM_LAYERS = len(LAYER_DIMS) - 1  # 6 linear layers
PAD = 128        # feature dims padded to the 128-lane width (in VMEM only)
BIAS_ROWS = 8    # sublane padding for the bias slab
F_IN = LAYER_DIMS[0]
F_OUT = LAYER_DIMS[-1]


def _round_up(x, m):
    return ((x + m - 1) // m) * m


# ---------------------------------------------------------------------------
# Kernel building blocks
# ---------------------------------------------------------------------------
def _pad_lanes(x):
    """(tile_b, F_IN) f32 -> (tile_b, 128) f32 with exact zeros in pad lanes."""
    tb = x.shape[0]
    zeros = jnp.zeros((tb, PAD - x.shape[1]), dtype=x.dtype)
    return jnp.concatenate([x, zeros], axis=-1)


def _mlp(h, w_ref, b_ref):
    """Padded MLP on a (tile_b, 128) f32 activation block.

    w_ref: (6, 128, 128) bf16 weight slab; layer i valid in [:in_i, :out_i],
           zero elsewhere.
    b_ref: (6, 8, 128) f32 bias slab; layer i valid in row 0, [:out_i], zero
           elsewhere.
    Zero padding of the slabs guarantees lanes >= the logical width stay
    exactly 0 through every layer, so no masking is needed. Matmul inputs are
    cast to bf16 (MXU-native on v5e/v6e/v7x); accumulation stays f32.
    """
    for layer in range(NUM_LAYERS):              # static Python unroll (6)
        w = w_ref[layer]                         # (128, 128) bf16, static index
        b = b_ref[layer, 0:1, :]                 # (1, 128) f32
        h = jnp.dot(h.astype(jnp.bfloat16), w,
                    preferred_element_type=jnp.float32) + b
        if layer != NUM_LAYERS - 1:
            h = jnp.maximum(h, 0.0)              # ReLU on the VPU, f32
    return h


def _forward_kernel(y_ref, w_ref, b_ref, out_ref):
    h = _pad_lanes(y_ref[...])                   # lane padding only in VMEM
    h = _mlp(h, w_ref, b_ref)
    out_ref[...] = h[:, :F_OUT].astype(out_ref.dtype)


def _rk4_kernel(y_ref, w_ref, b_ref, out_ref, *, num_steps, dt):
    """num_steps of classic RK4 with the MLP as dy/dt, all in one pallas_call.

    Incremental accumulation keeps only ~4 activation-sized temporaries live
    (y, acc, stage, k) instead of ~6.
    """
    dt = jnp.float32(dt)
    y0 = _pad_lanes(y_ref[...])                  # pad lanes stay exactly zero

    def step(_, y):
        k = _mlp(y, w_ref, b_ref)                          # k1
        acc = y + (dt / 6.0) * k
        stage = y + (0.5 * dt) * k
        k = _mlp(stage, w_ref, b_ref)                      # k2
        acc = acc + (dt / 3.0) * k
        stage = y + (0.5 * dt) * k
        k = _mlp(stage, w_ref, b_ref)                      # k3
        acc = acc + (dt / 3.0) * k
        stage = y + dt * k
        k = _mlp(stage, w_ref, b_ref)                      # k4
        return acc + (dt / 6.0) * k

    y = jax.lax.fori_loop(0, num_steps, step, y0, unroll=2)
    out_ref[...] = y[:, :F_OUT].astype(out_ref.dtype)


# ---------------------------------------------------------------------------
# BlockSpecs / tiling helpers
# ---------------------------------------------------------------------------
def _specs(tile_b):
    in_specs = [
        # State block: last dim (3) equals the full array last dim -> legal,
        # and HBM traffic is only 3 lanes per row instead of 128.
        pl.BlockSpec((tile_b, F_IN), lambda i: (i, 0)),
        # Constant index_map -> weight/bias slabs stay VMEM-resident.
        pl.BlockSpec((NUM_LAYERS, PAD, PAD), lambda i: (0, 0, 0)),
        pl.BlockSpec((NUM_LAYERS, BIAS_ROWS, PAD), lambda i: (0, 0, 0)),
    ]
    out_spec = pl.BlockSpec((tile_b, F_OUT), lambda i: (i, 0))
    return in_specs, out_spec


def _batch_tiling(batch, tile_b):
    """Pick (padded_batch, tile) with tile % 8 == 0 and padded_batch % tile == 0.

    Prefers >= 2 grid steps when there is enough work so both TensorCores on
    v7x get a share of the (parallel) batch axis.
    """
    b_pad = _round_up(batch, 8)
    tb = min(_round_up(int(tile_b), 8), b_pad)
    if b_pad // tb < 2 and b_pad >= 16:
        tb = _round_up(-(-b_pad // 2), 8)
    b_pad = _round_up(b_pad, tb)
    return b_pad, tb


# ---------------------------------------------------------------------------
# Wrappers
# ---------------------------------------------------------------------------
@functools.partial(jax.jit, static_argnames=("tile_b",))
def odefunc_forward(t, y, w_slab, b_slab, tile_b=2048):
    """Pallas-backed equivalent of ODEFunc.forward(t, y).

    Args:
      t: scalar time (ignored, kept for API parity with the PyTorch module).
      y: (B, 3) float32 state.
      w_slab: (6, 128, 128) bfloat16 packed, zero-padded weights (in, out).
      b_slab: (6, 8, 128) float32 packed, zero-padded biases (row 0 per layer).
      tile_b: batch tile size for the parallel batch grid.
    Returns:
      (B, 3) float32 dy/dt.
    """
    del t  # unused, same as the PyTorch module
    B = y.shape[0]
    b_pad, tb = _batch_tiling(B, tile_b)

    y_in = y.astype(jnp.float32)
    if b_pad != B:
        y_in = jnp.pad(y_in, ((0, b_pad - B), (0, 0)))   # batch-dim only (tiny)

    in_specs, out_spec = _specs(tb)
    out = pl.pallas_call(
        _forward_kernel,
        out_shape=jax.ShapeDtypeStruct((b_pad, F_OUT), jnp.float32),
        grid=(b_pad // tb,),
        in_specs=in_specs,
        out_specs=out_spec,
        compiler_params=pltpu.CompilerParams(
            dimension_semantics=("parallel",)),
    )(y_in, w_slab, b_slab)
    return out if b_pad == B else out[:B]


@functools.partial(jax.jit, static_argnames=("dt", "num_steps", "tile_b"))
def odefunc_integrate_rk4(y0, w_slab, b_slab, dt, num_steps, tile_b=1024):
    """Integrate dy/dt = net(y) for `num_steps` RK4 steps in ONE pallas_call.

    tile_b defaults to 1024 so the RK4 live temporaries comfortably fit the
    default scoped VMEM on v5e (16 MiB) as well as v6e/v7x.
    """
    B = y0.shape[0]
    b_pad, tb = _batch_tiling(B, tile_b)

    y_in = y0.astype(jnp.float32)
    if b_pad != B:
        y_in = jnp.pad(y_in, ((0, b_pad - B), (0, 0)))

    in_specs, out_spec = _specs(tb)
    out = pl.pallas_call(
        functools.partial(_rk4_kernel, num_steps=int(num_steps), dt=float(dt)),
        out_shape=jax.ShapeDtypeStruct((b_pad, F_OUT), jnp.float32),
        grid=(b_pad // tb,),
        in_specs=in_specs,
        out_specs=out_spec,
        compiler_params=pltpu.CompilerParams(
            dimension_semantics=("parallel",)),
    )(y_in, w_slab, b_slab)
    return out if b_pad == B else out[:B]


# ---------------------------------------------------------------------------
# Parameter helpers
# ---------------------------------------------------------------------------
def init_params(key):
    """Deterministic init matching nn.init.normal_(std=0.1) weights, zero bias."""
    params = []
    keys = jax.random.split(key, NUM_LAYERS)
    for i in range(NUM_LAYERS):
        fan_in, fan_out = LAYER_DIMS[i], LAYER_DIMS[i + 1]
        # PyTorch Linear weight is (out, in); we store the transpose (in, out)
        # so the kernel computes h @ W directly.
        w = 0.1 * jax.random.normal(keys[i], (fan_in, fan_out), dtype=jnp.float32)
        b = jnp.zeros((1, fan_out), dtype=jnp.float32)
        params.extend([w, b])
    return params


def pack_params(params):
    """Pack [W1,b1,...,W6,b6] into zero-padded slabs.

    Weights are stored as bf16 (MXU-native input dtype); biases stay f32.
    NOTE: exactness of the unmasked padded-lane math relies on the slabs being
    exactly zero outside the logical rectangles — always re-pack after any
    parameter update.
    """
    w_slab = jnp.zeros((NUM_LAYERS, PAD, PAD), dtype=jnp.float32)
    b_slab = jnp.zeros((NUM_LAYERS, BIAS_ROWS, PAD), dtype=jnp.float32)
    for i in range(NUM_LAYERS):
        w = params[2 * i]
        b = params[2 * i + 1].reshape(-1)
        w_slab = w_slab.at[i, : w.shape[0], : w.shape[1]].set(w)
        b_slab = b_slab.at[i, 0, : b.shape[0]].set(b)
    return w_slab.astype(jnp.bfloat16), b_slab


# ---------------------------------------------------------------------------
# Pure-JAX references (mirror the kernel's bf16-matmul / f32-accumulate math)
# ---------------------------------------------------------------------------
def reference_forward(t, y, params):
    del t
    h = y.astype(jnp.float32)
    for layer in range(NUM_LAYERS):
        w, b = params[2 * layer], params[2 * layer + 1]
        h = jnp.dot(h.astype(jnp.bfloat16), w.astype(jnp.bfloat16),
                    preferred_element_type=jnp.float32) + b
        if layer != NUM_LAYERS - 1:
            h = jnp.maximum(h, 0.0)
    return h


def reference_rk4(y0, params, dt, num_steps):
    y = y0.astype(jnp.float32)
    for _ in range(num_steps):
        k1 = reference_forward(None, y, params)
        k2 = reference_forward(None, y + 0.5 * dt * k1, params)
        k3 = reference_forward(None, y + 0.5 * dt * k2, params)
        k4 = reference_forward(None, y + dt * k3, params)
        y = y + (dt / 6.0) * (k1 + 2.0 * k2 + 2.0 * k3 + k4)
    return y


if __name__ == "__main__":
    key = jax.random.PRNGKey(0)
    pkey, ykey = jax.random.split(key)

    params = init_params(pkey)
    w_slab, b_slab = pack_params(params)

    # --- Small batch of SIR states: single tile, grid=(1,). ---
    B = 8
    y = jax.random.normal(ykey, (B, 3), dtype=jnp.float32)
    t = jnp.float32(0.0)

    out = jax.block_until_ready(odefunc_forward(t, y, w_slab, b_slab))
    ref = reference_forward(t, y, params)
    assert out.shape == (B, 3), out.shape
    assert jnp.allclose(out, ref, atol=5e-5, rtol=1e-2), "forward mismatch"

    # --- Ragged batch exercising the parallel batch grid + batch padding. ---
    B2 = 40
    y2 = jax.random.normal(jax.random.PRNGKey(1), (B2, 3), dtype=jnp.float32)
    out2 = jax.block_until_ready(odefunc_forward(t, y2, w_slab, b_slab, tile_b=16))
    ref2 = reference_forward(t, y2, params)
    assert out2.shape == (B2, 3), out2.shape
    assert jnp.allclose(out2, ref2, atol=5e-5, rtol=1e-2), "tiled forward mismatch"

    # --- Fused RK4 integrator: many RHS evals amortized in one pallas_call. ---
    num_steps, dt = 20, 0.05
    yT = jax.block_until_ready(
        odefunc_integrate_rk4(y, w_slab, b_slab, dt=dt, num_steps=num_steps))
    refT = reference_rk4(y, params, dt, num_steps)
    assert yT.shape == (B, 3), yT.shape
    assert jnp.allclose(yT, refT, atol=1e-4, rtol=1e-3), "rk4 mismatch"

    print("KERNEL_OK")
</pallas_src>

<mosaic_0001>
module attributes {stable_mosaic.version = 11 : i64} {
  func.func @_forward_kernel(%arg0: i32, %arg1: memref<8x3xf32, #tpu.memory_space<vmem>>, %arg2: memref<6x128x128xbf16, #tpu.memory_space<vmem>>, %arg3: memref<6x8x128xf32, #tpu.memory_space<vmem>>, %arg4: memref<8x3xf32, #tpu.memory_space<vmem>>) attributes {dimension_semantics = [#tpu.dimension_semantics<parallel>], iteration_bounds = array<i64: 1>, scalar_prefetch = 0 : i64, scratch_operands = 0 : i64, tpu.core_type = #tpu.core_type<tc>, window_params = [{transform_indices = @transform_0, window_bounds = array<i64: 8, 3>}, {pipeline_mode = #tpu.pipeline_mode<synchronous>, transform_indices = @transform_1, window_bounds = array<i64: 6, 128, 128>}, {pipeline_mode = #tpu.pipeline_mode<synchronous>, transform_indices = @transform_2, window_bounds = array<i64: 6, 8, 128>}, {transform_indices = @transform_3, window_bounds = array<i64: 8, 3>}]} {
    %c0 = arith.constant 0 : index
    %c0_0 = arith.constant 0 : index
    %0 = vector.load %arg1[%c0, %c0_0] : memref<8x3xf32, #tpu.memory_space<vmem>>, vector<8x3xf32>
    %cst = arith.constant 0.000000e+00 : f32
    %1 = vector.broadcast %cst : f32 to vector<8x125xf32>
    %2 = tpu.concatenate %0, %1 in 1 : vector<8x3xf32>, vector<8x125xf32> -> vector<8x128xf32>
    %c0_1 = arith.constant 0 : index
    %c0_2 = arith.constant 0 : index
    %c0_3 = arith.constant 0 : index
    %3 = vector.load %arg2[%c0_1, %c0_2, %c0_3] : memref<6x128x128xbf16, #tpu.memory_space<vmem>>, vector<1x128x128xbf16>
    %4 = vector.shape_cast %3 : vector<1x128x128xbf16> to vector<128x128xbf16>
    %c0_4 = arith.constant 0 : index
    %c0_5 = arith.constant 0 : index
    %c0_6 = arith.constant 0 : index
    %5 = vector.load %arg3[%c0_4, %c0_5, %c0_6] : memref<6x8x128xf32, #tpu.memory_space<vmem>>, vector<1x1x128xf32>
    %6 = vector.shape_cast %5 : vector<1x1x128xf32> to vector<1x128xf32>
    %7 = arith.truncf %2 : vector<8x128xf32> to vector<8x128xbf16>
    %cst_7 = arith.constant dense<0.000000e+00> : vector<8x128xf32>
    %8 = tpu.matmul %7, %4, %cst_7 {dimension_numbers = #tpu.dot_dimension_numbers<[1], [0], [0], [1], [0, 0, 1, 1], [], []>} : vector<8x128xbf16>, vector<128x128xbf16>, vector<8x128xf32> -> vector<8x128xf32>
    %9 = vector.broadcast %6 : vector<1x128xf32> to vector<8x128xf32>
    %10 = arith.addf %8, %9 : vector<8x128xf32>
    %cst_8 = arith.constant 0.000000e+00 : f32
    %11 = vector.broadcast %cst_8 : f32 to vector<8x128xf32>
    %12 = arith.maximumf %10, %11 : vector<8x128xf32>
    %c1 = arith.constant 1 : index
    %c0_9 = arith.constant 0 : index
    %c0_10 = arith.constant 0 : index
    %13 = vector.load %arg2[%c1, %c0_9, %c0_10] : memref<6x128x128xbf16, #tpu.memory_space<vmem>>, vector<1x128x128xbf16>
    %14 = vector.shape_cast %13 : vector<1x128x128xbf16> to vector<128x128xbf16>
    %c1_11 = arith.constant 1 : index
    %c0_12 = arith.constant 0 : index
    %c0_13 = arith.constant 0 : index
    %15 = vector.load %arg3[%c1_11, %c0_12, %c0_13] : memref<6x8x128xf32, #tpu.memory_space<vmem>>, vector<1x1x128xf32>
    %16 = vector.shape_cast %15 : vector<1x1x128xf32> to vector<1x128xf32>
    %17 = arith.truncf %12 : vector<8x128xf32> to vector<8x128xbf16>
    %cst_14 = arith.constant dense<0.000000e+00> : vector<8x128xf32>
    %18 = tpu.matmul %17, %14, %cst_14 {dimension_numbers = #tpu.dot_dimension_numbers<[1], [0], [0], [1], [0, 0, 1, 1], [], []>} : vector<8x128xbf16>, vector<128x128xbf16>, vector<8x128xf32> -> vector<8x128xf32>
    %19 = vector.broadcast %16 : vector<1x128xf32> to vector<8x128xf32>
    %20 = arith.addf %18, %19 : vector<8x128xf32>
    %cst_15 = arith.constant 0.000000e+00 : f32
    %21 = vector.broadcast %cst_15 : f32 to vector<8x128xf32>
    %22 = arith.maximumf %20, %21 : vector<8x128xf32>
    %c2 = arith.constant 2 : index
    %c0_16 = arith.constant 0 : index
    %c0_17 = arith.constant 0 : index
    %23 = vector.load %arg2[%c2, %c0_16, %c0_17] : memref<6x128x128xbf16, #tpu.memory_space<vmem>>, vector<1x128x128xbf16>
    %24 = vector.shape_cast %23 : vector<1x128x128xbf16> to vector<128x128xbf16>
    %c2_18 = arith.constant 2 : index
    %c0_19 = arith.constant 0 : index
    %c0_20 = arith.constant 0 : index
    %25 = vector.load %arg3[%c2_18, %c0_19, %c0_20] : memref<6x8x128xf32, #tpu.memory_space<vmem>>, vector<1x1x128xf32>
    %26 = vector.shape_cast %25 : vector<1x1x128xf32> to vector<1x128xf32>
    %27 = arith.truncf %22 : vector<8x128xf32> to vector<8x128xbf16>
    %cst_21 = arith.constant dense<0.000000e+00> : vector<8x128xf32>
    %28 = tpu.matmul %27, %24, %cst_21 {dimension_numbers = #tpu.dot_dimension_numbers<[1], [0], [0], [1], [0, 0, 1, 1], [], []>} : vector<8x128xbf16>, vector<128x128xbf16>, vector<8x128xf32> -> vector<8x128xf32>
    %29 = vector.broadcast %26 : vector<1x128xf32> to vector<8x128xf32>
    %30 = arith.addf %28, %29 : vector<8x128xf32>
    %cst_22 = arith.constant 0.000000e+00 : f32
    %31 = vector.broadcast %cst_22 : f32 to vector<8x128xf32>
    %32 = arith.maximumf %30, %31 : vector<8x128xf32>
    %c3 = arith.constant 3 : index
    %c0_23 = arith.constant 0 : index
    %c0_24 = arith.constant 0 : index
    %33 = vector.load %arg2[%c3, %c0_23, %c0_24] : memref<6x128x128xbf16, #tpu.memory_space<vmem>>, vector<1x128x128xbf16>
    %34 = vector.shape_cast %33 : vector<1x128x128xbf16> to vector<128x128xbf16>
    %c3_25 = arith.constant 3 : index
    %c0_26 = arith.constant 0 : index
    %c0_27 = arith.constant 0 : index
    %35 = vector.load %arg3[%c3_25, %c0_26, %c0_27] : memref<6x8x128xf32, #tpu.memory_space<vmem>>, vector<1x1x128xf32>
    %36 = vector.shape_cast %35 : vector<1x1x128xf32> to vector<1x128xf32>
    %37 = arith.truncf %32 : vector<8x128xf32> to vector<8x128xbf16>
    %cst_28 = arith.constant dense<0.000000e+00> : vector<8x128xf32>
    %38 = tpu.matmul %37, %34, %cst_28 {dimension_numbers = #tpu.dot_dimension_numbers<[1], [0], [0], [1], [0, 0, 1, 1], [], []>} : vector<8x128xbf16>, vector<128x128xbf16>, vector<8x128xf32> -> vector<8x128xf32>
    %39 = vector.broadcast %36 : vector<1x128xf32> to vector<8x128xf32>
    %40 = arith.addf %38, %39 : vector<8x128xf32>
    %cst_29 = arith.constant 0.000000e+00 : f32
    %41 = vector.broadcast %cst_29 : f32 to vector<8x128xf32>
    %42 = arith.maximumf %40, %41 : vector<8x128xf32>
    %c4 = arith.constant 4 : index
    %c0_30 = arith.constant 0 : index
    %c0_31 = arith.constant 0 : index
    %43 = vector.load %arg2[%c4, %c0_30, %c0_31] : memref<6x128x128xbf16, #tpu.memory_space<vmem>>, vector<1x128x128xbf16>
    %44 = vector.shape_cast %43 : vector<1x128x128xbf16> to vector<128x128xbf16>
    %c4_32 = arith.constant 4 : index
    %c0_33 = arith.constant 0 : index
    %c0_34 = arith.constant 0 : index
    %45 = vector.load %arg3[%c4_32, %c0_33, %c0_34] : memref<6x8x128xf32, #tpu.memory_space<vmem>>, vector<1x1x128xf32>
    %46 = vector.shape_cast %45 : vector<1x1x128xf32> to vector<1x128xf32>
    %47 = arith.truncf %42 : vector<8x128xf32> to vector<8x128xbf16>
    %cst_35 = arith.constant dense<0.000000e+00> : vector<8x128xf32>
    %48 = tpu.matmul %47, %44, %cst_35 {dimension_numbers = #tpu.dot_dimension_numbers<[1], [0], [0], [1], [0, 0, 1, 1], [], []>} : vector<8x128xbf16>, vector<128x128xbf16>, vector<8x128xf32> -> vector<8x128xf32>
    %49 = vector.broadcast %46 : vector<1x128xf32> to vector<8x128xf32>
    %50 = arith.addf %48, %49 : vector<8x128xf32>
    %cst_36 = arith.constant 0.000000e+00 : f32
    %51 = vector.broadcast %cst_36 : f32 to vector<8x128xf32>
    %52 = arith.maximumf %50, %51 : vector<8x128xf32>
    %c5 = arith.constant 5 : index
    %c0_37 = arith.constant 0 : index
    %c0_38 = arith.constant 0 : index
    %53 = vector.load %arg2[%c5, %c0_37, %c0_38] : memref<6x128x128xbf16, #tpu.memory_space<vmem>>, vector<1x128x128xbf16>
    %54 = vector.shape_cast %53 : vector<1x128x128xbf16> to vector<128x128xbf16>
    %c5_39 = arith.constant 5 : index
    %c0_40 = arith.constant 0 : index
    %c0_41 = arith.constant 0 : index
    %55 = vector.load %arg3[%c5_39, %c0_40, %c0_41] : memref<6x8x128xf32, #tpu.memory_space<vmem>>, vector<1x1x128xf32>
    %56 = vector.shape_cast %55 : vector<1x1x128xf32> to vector<1x128xf32>
    %57 = arith.truncf %52 : vector<8x128xf32> to vector<8x128xbf16>
    %cst_42 = arith.constant dense<0.000000e+00> : vector<8x128xf32>
    %58 = tpu.matmul %57, %54, %cst_42 {dimension_numbers = #tpu.dot_dimension_numbers<[1], [0], [0], [1], [0, 0, 1, 1], [], []>} : vector<8x128xbf16>, vector<128x128xbf16>, vector<8x128xf32> -> vector<8x128xf32>
    %59 = vector.broadcast %56 : vector<1x128xf32> to vector<8x128xf32>
    %60 = arith.addf %58, %59 : vector<8x128xf32>
    %61 = vector.extract_strided_slice %60 {offsets = [0, 0], sizes = [8, 3], strides = [1, 1]} : vector<8x128xf32> to vector<8x3xf32>
    %c0_43 = arith.constant 0 : index
    %c0_44 = arith.constant 0 : index
    %62 = vector.load %arg4[%c0_43, %c0_44] : memref<8x3xf32, #tpu.memory_space<vmem>>, vector<8x3xf32>
    tpu.vector_store %arg4[%c0_43, %c0_44], %61 {strides = array<i32>} : memref<8x3xf32, #tpu.memory_space<vmem>>, vector<8x3xf32>,
    return
  }
  func.func @transform_0(%arg0: i32) -> (i32, i32) {
    %c0_i32 = arith.constant 0 : i32
    %c0_i32_0 = arith.constant 0 : i32
    return %arg0, %c0_i32 : i32, i32
  }
  func.func @transform_1(%arg0: i32) -> (i32, i32, i32) {
    %c0_i32 = arith.constant 0 : i32
    %c0_i32_0 = arith.constant 0 : i32
    %c0_i32_1 = arith.constant 0 : i32
    %c0_i32_2 = arith.constant 0 : i32
    return %c0_i32, %c0_i32_0, %c0_i32_1 : i32, i32, i32
  }
  func.func @transform_2(%arg0: i32) -> (i32, i32, i32) {
    %c0_i32 = arith.constant 0 : i32
    %c0_i32_0 = arith.constant 0 : i32
    %c0_i32_1 = arith.constant 0 : i32
    %c0_i32_2 = arith.constant 0 : i32
    return %c0_i32, %c0_i32_0, %c0_i32_1 : i32, i32, i32
  }
  func.func @transform_3(%arg0: i32) -> (i32, i32) {
    %c0_i32 = arith.constant 0 : i32
    %c0_i32_0 = arith.constant 0 : i32
    return %arg0, %c0_i32 : i32, i32
  }
}

</mosaic_0001>

<llo_original>
// kernel: odefunc_forward.1
$region0: #{odefunc_forward.1}
  #allocation0 [shape = 'u32[]', space=smem, size = 0x4, offset = 0x4, fixed_abs, tag = 'smem constant byte address 0x4 - core index']
  #allocation1 [shape = 'u32[144,128]{1,0:T(1,128)}', space=vmem, size = 0x12000, scoped, tag = 'internal scratch']
  %s0 = inlined_call_operand.vmem [shape: f32[8,3], index: 0, kind: input, shape index: {}]
  %s1 = inlined_call_operand.hbm [shape: bf16[6,128,128], index: 1, kind: input, shape index: {}]
  %s2 = inlined_call_operand.hbm [shape: f32[6,8,128], index: 2, kind: input, shape index: {}]
  %s3 = inlined_call_operand.vmem [shape: f32[8,3], index: 3, kind: output, shape index: {}]
  %s4 = sld [smem:[#allocation0]]
  $region30: #{odefunc_forward.1} parent=0
    _
  %s6 = ssub.s32 1, %s4
  %s7 = scalar_select 0, %s6, %s4
  $region1: #{odefunc_forward.1} parent=0
    #allocation2 [shape = 'u8[196608]{0}', space=vmem, size = 0x30000, scoped, tag = 'input window, operand 1, single buffered']
    #allocation3 [shape = 's32[1]{0}', space=sflag, size = 0x4, scoped, tag = 'scoped memory for odefunc_forward.1']
    #allocation4 [shape = 'u8[24576]{0}', space=vmem, size = 0x6000, scoped, tag = 'input window, operand 2, single buffered']
    #allocation5 [shape = 's32[1]{0}', space=sflag, size = 0x4, scoped, tag = 'scoped memory for odefunc_forward.1']
    %8 = vsyncpa [#allocation3], 0
    %9 = vsyncpa [#allocation5], 0
    // Predicated region
    $region2: #{odefunc_forward.1} parent=1 // pred_check
      _
    $region3: #{odefunc_forward.1} parent=1 // pred_check_branch
      %11 = sbr.rel (0) target = $region5
    $region4: #{odefunc_forward.1} parent=1 // pred_region
      _
    $region5: #{odefunc_forward.1} parent=1 // pred_fallthru
      _
    // Predicated region
    $region6: #{odefunc_forward.1} parent=1 // pred_check
      _
    $region7: #{odefunc_forward.1} parent=1 // pred_check_branch
      %13 = sbr.rel (0) target = $region9
    $region8: #{odefunc_forward.1} parent=1 // pred_region
      %s15 = ssub.s32 6144, 6144
      %16 = vsyncadd [#allocation3], %s15
      %s17 = sshll.u32 [#allocation2], 4
      %s18 = int_to_ptr.vmem [resolvable:$true] %s17
      %23 = dma.hbm_to_vmem [thread:$0]  %s1, 6144, %s18, [#allocation3], 64, 64, 4
    $region9: #{odefunc_forward.1} parent=1 // pred_fallthru
      _
    // Predicated region
    $region10: #{odefunc_forward.1} parent=1 // pred_check
      _
    $region11: #{odefunc_forward.1} parent=1 // pred_check_branch
      %25 = sbr.rel (0) target = $region13
    $region12: #{odefunc_forward.1} parent=1 // pred_region
      %s27 = ssub.s32 768, 768
      %28 = vsyncadd [#allocation5], %s27
      %s29 = sshll.u32 [#allocation4], 4
      %s30 = int_to_ptr.vmem [resolvable:$true] %s29
      %35 = dma.hbm_to_vmem [thread:$0]  %s2, 768, %s30, [#allocation5], 128, 128, 8
    $region13: #{odefunc_forward.1} parent=1 // pred_fallthru
      _
    // Predicated region
    $region14: #{odefunc_forward.1} parent=1 // pred_check
      _
    $region15: #{odefunc_forward.1} parent=1 // pred_check_branch
      %37 = sbr.rel (0) target = $region17
    $region16: #{odefunc_forward.1} parent=1 // pred_region
      %38 = dma.done [#allocation3], 6144
    $region17: #{odefunc_forward.1} parent=1 // pred_fallthru
      _
    // Predicated region
    $region18: #{odefunc_forward.1} parent=1 // pred_check
      _
    $region19: #{odefunc_forward.1} parent=1 // pred_check_branch
      %40 = sbr.rel (0) target = $region21
    $region20: #{odefunc_forward.1} parent=1 // pred_region
      %41 = dma.done [#allocation5], 768
    $region21: #{odefunc_forward.1} parent=1 // pred_fallthru
      _
    %v43 = vld [vmem:[%s0] sm:$0xff]
    %vm44 = vcmask 23552
    %v45 = vsel %vm44, %v43, 0.0
    %v46 = vld [vmem:[#allocation2] sm:$0xf]
    %v47 = vld [vmem:[#allocation2 + $0x4] sm:$0xf]
    %v48 = vld [vmem:[#allocation2 + $0x8] sm:$0xf]
    %v49 = vld [vmem:[#allocation2 + $0xc] sm:$0xf]
    %v50 = vld [vmem:[#allocation2 + $0x10] sm:$0xf]
    %v51 = vld [vmem:[#allocation2 + $0x14] sm:$0xf]
    %v52 = vld [vmem:[#allocation2 + $0x18] sm:$0xf]
    %v53 = vld [vmem:[#allocation2 + $0x1c] sm:$0xf]
    %v54 = vld [vmem:[#allocation2 + $0x20] sm:$0xf]
    %v55 = vld [vmem:[#allocation2 + $0x24] sm:$0xf]
    %v56 = vld [vmem:[#allocation2 + $0x28] sm:$0xf]
    %v57 = vld [vmem:[#allocation2 + $0x2c] sm:$0xf]
    %v58 = vld [vmem:[#allocation2 + $0x30] sm:$0xf]
    %v59 = vld [vmem:[#allocation2 + $0x34] sm:$0xf]
    %v60 = vld [vmem:[#allocation2 + $0x38] sm:$0xf]
    %v61 = vld [vmem:[#allocation2 + $0x3c] sm:$0xf]
    %v62 = vld [vmem:[#allocation4] sm:$0x1]
    %v63 = vpack.c.bf16 %v45, %v45
    %v64 = vlaneseq
    %v65 = vshrl.u32 %v64, 7
    %v66 = vsub.s32 0, %v65
    %v67 = vrot.slane %v62, %v66
    %v84 = vunpack.c.l.b16 %v46
    %v85 = vunpack.c.l.b16 %v47
    %v86 = vunpack.c.l.b16 %v48
    %v87 = vunpack.c.l.b16 %v49
    %v88 = vunpack.c.l.b16 %v50
    %v89 = vunpack.c.l.b16 %v51
    %v90 = vunpack.c.l.b16 %v52
    %v91 = vunpack.c.l.b16 %v53
    %v92 = vunpack.c.l.b16 %v54
    %v93 = vunpack.c.l.b16 %v55
    %v94 = vunpack.c.l.b16 %v56
    %v95 = vunpack.c.l.b16 %v57
    %v96 = vunpack.c.l.b16 %v58
    %v97 = vunpack.c.l.b16 %v59
    %v98 = vunpack.c.l.b16 %v60
    %v99 = vunpack.c.l.b16 %v61
    %v100 = vpack.c.b16 %v85, %v84
    %v101 = vpack.c.b16 %v87, %v86
    %v102 = vpack.c.b16 %v89, %v88
    %v103 = vpack.c.b16 %v91, %v90
    %v104 = vpack.c.b16 %v93, %v92
    %v105 = vpack.c.b16 %v95, %v94
    %v106 = vpack.c.b16 %v97, %v96
    %v107 = vpack.c.b16 %v99, %v98
    %116 = vmatprep.subr.bf16.mxu0 0
    %117 = vmatpush1.bf16.msra.mxu0 %v107
    %118 = vmatprep.subr.bf16.mxu0 0
    %119 = vmatpush1.bf16.msra.mxu0 %v106
    %120 = vmatprep.subr.bf16.mxu0 0
    %121 = vmatpush1.bf16.msra.mxu0 %v105
    %122 = vmatprep.subr.bf16.mxu0 0
    %123 = vmatpush1.bf16.msra.mxu0 %v104
    %124 = vmatprep.subr.bf16.mxu0 0
    %125 = vmatpush1.bf16.msra.mxu0 %v103
    %126 = vmatprep.subr.bf16.mxu0 0
    %127 = vmatpush1.bf16.msra.mxu0 %v102
    %128 = vmatprep.subr.bf16.mxu0 0
    %129 = vmatpush1.bf16.msra.mxu0 %v101
    %130 = vmatprep.subr.bf16.mxu0 0
    %131 = vmatpush1.bf16.msra.mxu0 %v100
    %132 = vmatprep.subr.bf16.mxu0 0
    %133 = vmatpush2.bf16.msra.mxu0 0
    %134 = vmatprep.subr.bf16.mxu0 0
    %135 = vmatpush2.bf16.msra.mxu0 0
    %136 = vmatprep.subr.bf16.mxu0 0
    %137 = vmatpush2.bf16.msra.mxu0 0
    %138 = vmatprep.subr.bf16.mxu0 0
    %139 = vmatpush2.bf16.msra.mxu0 0
    %140 = vmatprep.subr.bf16.mxu0 0
    %141 = vmatpush2.bf16.msra.mxu0 0
    %142 = vmatprep.subr.bf16.mxu0 0
    %143 = vmatpush2.bf16.msra.mxu0 0
    %144 = vmatprep.subr.bf16.mxu0 0
    %145 = vmatpush2.bf16.msra.mxu0 0
    %146 = vmatprep.subr.bf16.mxu0 0
    %147 = vmatpush2.bf16.msra.mxu0 0
    %148 = vmatprep.mubr.bf16.mxu0 0
    %149 = vmatmul.mubr.bf16.gmra.mxu0 %v63
    %v150 = vpop.f32.mrf.mxu0
    %v151 = vadd.f32 %v67, %v150
    %v152 = vpop.f32.mrf.mxu0
    %v153 = vpop.f32.mrf.mxu0
    %v154 = vpop.f32.mrf.mxu0
    %155 = vdwg.mxu0
    %v156 = vmax.f32 %v151, 0.0
    %s157 = scalar_lea.vmem [#allocation2], 64
    %v158 = vld [vmem:[%s157] sm:$0xf]
    %v159 = vld [vmem:[%s157 + $0x4] sm:$0xf]
    %v160 = vld [vmem:[%s157 + $0x8] sm:$0xf]
    %v161 = vld [vmem:[%s157 + $0xc] sm:$0xf]
    %v162 = vld [vmem:[%s157 + $0x10] sm:$0xf]
    %v163 = vld [vmem:[%s157 + $0x14] sm:$0xf]
    %v164 = vld [vmem:[%s157 + $0x18] sm:$0xf]
    %v165 = vld [vmem:[%s157 + $0x1c] sm:$0xf]
    %v166 = vld [vmem:[%s157 + $0x20] sm:$0xf]
    %v167 = vld [vmem:[%s157 + $0x24] sm:$0xf]
    %v168 = vld [vmem:[%s157 + $0x28] sm:$0xf]
    %v169 = vld [vmem:[%s157 + $0x2c] sm:$0xf]
    %v170 = vld [vmem:[%s157 + $0x30] sm:$0xf]
    %v171 = vld [vmem:[%s157 + $0x34] sm:$0xf]
    %v172 = vld [vmem:[%s157 + $0x38] sm:$0xf]
    %v173 = vld [vmem:[%s157 + $0x3c] sm:$0xf]
    %s174 = scalar_lea.vmem [#allocation4], 8
    %v175 = vld [vmem:[%s174] sm:$0x1]
    %v176 = vpack.c.bf16 %v156, %v156
    %v177 = vlaneseq
    %v178 = vshrl.u32 %v177, 7
    %v179 = vsub.s32 0, %v178
    %v180 = vrot.slane %v175, %v179
    %v197 = vunpack.c.l.b16 %v158
    %v198 = vunpack.c.l.b16 %v159
    %v199 = vunpack.c.l.b16 %v160
    %v200 = vunpack.c.l.b16 %v161
    %v201 = vunpack.c.l.b16 %v162
    %v202 = vunpack.c.l.b16 %v163
    %v203 = vunpack.c.l.b16 %v164
    %v204 = vunpack.c.l.b16 %v165
    %v205 = vunpack.c.l.b16 %v166
    %v206 = vunpack.c.l.b16 %v167
    %v207 = vunpack.c.l.b16 %v168
    %v208 = vunpack.c.l.b16 %v169
    %v209 = vunpack.c.l.b16 %v170
    %v210 = vunpack.c.l.b16 %v171
    %v211 = vunpack.c.l.b16 %v172
    %v212 = vunpack.c.l.b16 %v173
    %v213 = vpack.c.b16 %v198, %v197
    %v214 = vpack.c.b16 %v200, %v199
    %v215 = vpack.c.b16 %v202, %v201
    %v216 = vpack.c.b16 %v204, %v203
    %v217 = vpack.c.b16 %v206, %v205
    %v218 = vpack.c.b16 %v208, %v207
    %v219 = vpack.c.b16 %v210, %v209
    %v220 = vpack.c.b16 %v212, %v211
    %229 = vmatprep.subr.bf16.mxu0 0
    %230 = vmatpush1.bf16.msra.mxu0 %v220
    %231 = vmatprep.subr.bf16.mxu0 0
    %232 = vmatpush1.bf16.msra.mxu0 %v219
    %233 = vmatprep.subr.bf16.mxu0 0
    %234 = vmatpush1.bf16.msra.mxu0 %v218
    %235 = vmatprep.subr.bf16.mxu0 0
    %236 = vmatpush1.bf16.msra.mxu0 %v217
    %237 = vmatprep.subr.bf16.mxu0 0
    %238 = vmatpush1.bf16.msra.mxu0 %v216
    %239 = vmatprep.subr.bf16.mxu0 0
    %240 = vmatpush1.bf16.msra.mxu0 %v215
    %241 = vmatprep.subr.bf16.mxu0 0
    %242 = vmatpush1.bf16.msra.mxu0 %v214
    %243 = vmatprep.subr.bf16.mxu0 0
    %244 = vmatpush1.bf16.msra.mxu0 %v213
    %245 = vmatprep.subr.bf16.mxu0 0
    %246 = vmatpush2.bf16.msra.mxu0 0
    %247 = vmatprep.subr.bf16.mxu0 0
    %248 = vmatpush2.bf16.msra.mxu0 0
    %249 = vmatprep.subr.bf16.mxu0 0
    %250 = vmatpush2.bf16.msra.mxu0 0
    %251 = vmatprep.subr.bf16.mxu0 0
    %252 = vmatpush2.bf16.msra.mxu0 0
    %253 = vmatprep.subr.bf16.mxu0 0
    %254 = vmatpush2.bf16.msra.mxu0 0
    %255 = vmatprep.subr.bf16.mxu0 0
    %256 = vmatpush2.bf16.msra.mxu0 0
    %257 = vmatprep.subr.bf16.mxu0 0
    %258 = vmatpush2.bf16.msra.mxu0 0
    %259 = vmatprep.subr.bf16.mxu0 0
    %260 = vmatpush2.bf16.msra.mxu0 0
    %261 = vmatprep.mubr.bf16.mxu0 0
    %262 = vmatmul.mubr.bf16.gmra.mxu0 %v176
    %v263 = vpop.f32.mrf.mxu0
    %v264 = vadd.f32 %v180, %v263
    %v265 = vpop.f32.mrf.mxu0
    %v266 = vpop.f32.mrf.mxu0
    %v267 = vpop.f32.mrf.mxu0
    %268 = vdwg.mxu0
    %v269 = vmax.f32 %v264, 0.0
    %s270 = scalar_lea.vmem [#allocation2], 128
    %v271 = vld [vmem:[%s270] sm:$0xf]
    %v272 = vld [vmem:[%s270 + $0x4] sm:$0xf]
    %v273 = vld [vmem:[%s270 + $0x8] sm:$0xf]
    %v274 = vld [vmem:[%s270 + $0xc] sm:$0xf]
    %v275 = vld [vmem:[%s270 + $0x10] sm:$0xf]
    %v276 = vld [vmem:[%s270 + $0x14] sm:$0xf]
    %v277 = vld [vmem:[%s270 + $0x18] sm:$0xf]
    %v278 = vld [vmem:[%s270 + $0x1c] sm:$0xf]
    %v279 = vld [vmem:[%s270 + $0x20] sm:$0xf]
    %v280 = vld [vmem:[%s270 + $0x24] sm:$0xf]
    %v281 = vld [vmem:[%s270 + $0x28] sm:$0xf]
    %v282 = vld [vmem:[%s270 + $0x2c] sm:$0xf]
    %v283 = vld [vmem:[%s270 + $0x30] sm:$0xf]
    %v284 = vld [vmem:[%s270 + $0x34] sm:$0xf]
    %v285 = vld [vmem:[%s270 + $0x38] sm:$0xf]
    %v286 = vld [vmem:[%s270 + $0x3c] sm:$0xf]
    %s287 = scalar_lea.vmem [#allocation4], 16
    %v288 = vld [vmem:[%s287] sm:$0x1]
    %v289 = vpack.c.bf16 %v269, %v269
    %v290 = vlaneseq
    %v291 = vshrl.u32 %v290, 7
    %v292 = vsub.s32 0, %v291
    %v293 = vrot.slane %v288, %v292
    %v310 = vunpack.c.l.b16 %v271
    %v311 = vunpack.c.l.b16 %v272
    %v312 = vunpack.c.l.b16 %v273
    %v313 = vunpack.c.l.b16 %v274
    %v314 = vunpack.c.l.b16 %v275
    %v315 = vunpack.c.l.b16 %v276
    %v316 = vunpack.c.l.b16 %v277
    %v317 = vunpack.c.l.b16 %v278
    %v318 = vunpack.c.l.b16 %v279
    %v319 = vunpack.c.l.b16 %v280
    %v320 = vunpack.c.l.b16 %v281
    %v321 = vunpack.c.l.b16 %v282
    %v322 = vunpack.c.l.b16 %v283
    %v323 = vunpack.c.l.b16 %v284
    %v324 = vunpack.c.l.b16 %v285
    %v325 = vunpack.c.l.b16 %v286
    %v326 = vpack.c.b16 %v311, %v310
    %v327 = vpack.c.b16 %v313, %v312
    %v328 = vpack.c.b16 %v315, %v314
    %v329 = vpack.c.b16 %v317, %v316
    %v330 = vpack.c.b16 %v319, %v318
    %v331 = vpack.c.b16 %v321, %v320
    %v332 = vpack.c.b16 %v323, %v322
    %v333 = vpack.c.b16 %v325, %v324
    %342 = vmatprep.subr.bf16.mxu0 0
    %343 = vmatpush1.bf16.msra.mxu0 %v333
    %344 = vmatprep.subr.bf16.mxu0 0
    %345 = vmatpush1.bf16.msra.mxu0 %v332
    %346 = vmatprep.subr.bf16.mxu0 0
    %347 = vmatpush1.bf16.msra.mxu0 %v331
    %348 = vmatprep.subr.bf16.mxu0 0
    %349 = vmatpush1.bf16.msra.mxu0 %v330
    %350 = vmatprep.subr.bf16.mxu0 0
    %351 = vmatpush1.bf16.msra.mxu0 %v329
    %352 = vmatprep.subr.bf16.mxu0 0
    %353 = vmatpush1.bf16.msra.mxu0 %v328
    %354 = vmatprep.subr.bf16.mxu0 0
    %355 = vmatpush1.bf16.msra.mxu0 %v327
    %356 = vmatprep.subr.bf16.mxu0 0
    %357 = vmatpush1.bf16.msra.mxu0 %v326
    %358 = vmatprep.subr.bf16.mxu0 0
    %359 = vmatpush2.bf16.msra.mxu0 0
    %360 = vmatprep.subr.bf16.mxu0 0
    %361 = vmatpush2.bf16.msra.mxu0 0
    %362 = vmatprep.subr.bf16.mxu0 0
    %363 = vmatpush2.bf16.msra.mxu0 0
    %364 = vmatprep.subr.bf16.mxu0 0
    %365 = vmatpush2.bf16.msra.mxu0 0
    %366 = vmatprep.subr.bf16.mxu0 0
    %367 = vmatpush2.bf16.msra.mxu0 0
    %368 = vmatprep.subr.bf16.mxu0 0
    %369 = vmatpush2.bf16.msra.mxu0 0
    %370 = vmatprep.subr.bf16.mxu0 0
    %371 = vmatpush2.bf16.msra.mxu0 0
    %372 = vmatprep.subr.bf16.mxu0 0
    %373 = vmatpush2.bf16.msra.mxu0 0
    %374 = vmatprep.mubr.bf16.mxu0 0
    %375 = vmatmul.mubr.bf16.gmra.mxu0 %v289
    %v376 = vpop.f32.mrf.mxu0
    %v377 = vadd.f32 %v293, %v376
    %v378 = vpop.f32.mrf.mxu0
    %v379 = vpop.f32.mrf.mxu0
    %v380 = vpop.f32.mrf.mxu0
    %381 = vdwg.mxu0
    %v382 = vmax.f32 %v377, 0.0
    %s383 = scalar_lea.vmem [#allocation2], 192
    %v384 = vld [vmem:[%s383] sm:$0xf]
    %v385 = vld [vmem:[%s383 + $0x4] sm:$0xf]
    %v386 = vld [vmem:[%s383 + $0x8] sm:$0xf]
    %v387 = vld [vmem:[%s383 + $0xc] sm:$0xf]
    %v388 = vld [vmem:[%s383 + $0x10] sm:$0xf]
    %v389 = vld [vmem:[%s383 + $0x14] sm:$0xf]
    %v390 = vld [vmem:[%s383 + $0x18] sm:$0xf]
    %v391 = vld [vmem:[%s383 + $0x1c] sm:$0xf]
    %v392 = vld [vmem:[%s383 + $0x20] sm:$0xf]
    %v393 = vld [vmem:[%s383 + $0x24] sm:$0xf]
    %v394 = vld [vmem:[%s383 + $0x28] sm:$0xf]
    %v395 = vld [vmem:[%s383 + $0x2c] sm:$0xf]
    %v396 = vld [vmem:[%s383 + $0x30] sm:$0xf]
    %v397 = vld [vmem:[%s383 + $0x34] sm:$0xf]
    %v398 = vld [vmem:[%s383 + $0x38] sm:$0xf]
    %v399 = vld [vmem:[%s383 + $0x3c] sm:$0xf]
    %s400 = scalar_lea.vmem [#allocation4], 24
    %v401 = vld [vmem:[%s400] sm:$0x1]
    %v402 = vpack.c.bf16 %v382, %v382
    %v403 = vlaneseq
    %v404 = vshrl.u32 %v403, 7
    %v405 = vsub.s32 0, %v404
    %v406 = vrot.slane %v401, %v405
    %v423 = vunpack.c.l.b16 %v384
    %v424 = vunpack.c.l.b16 %v385
    %v425 = vunpack.c.l.b16 %v386
    %v426 = vunpack.c.l.b16 %v387
    %v427 = vunpack.c.l.b16 %v388
    %v428 = vunpack.c.l.b16 %v389
    %v429 = vunpack.c.l.b16 %v390
    %v430 = vunpack.c.l.b16 %v391
    %v431 = vunpack.c.l.b16 %v392
    %v432 = vunpack.c.l.b16 %v393
    %v433 = vunpack.c.l.b16 %v394
    %v434 = vunpack.c.l.b16 %v395
    %v435 = vunpack.c.l.b16 %v396
    %v436 = vunpack.c.l.b16 %v397
    %v437 = vunpack.c.l.b16 %v398
    %v438 = vunpack.c.l.b16 %v399
    %v439 = vpack.c.b16 %v424, %v423
    %v440 = vpack.c.b16 %v426, %v425
    %v441 = vpack.c.b16 %v428, %v427
    %v442 = vpack.c.b16 %v430, %v429
    %v443 = vpack.c.b16 %v432, %v431
    %v444 = vpack.c.b16 %v434, %v433
    %v445 = vpack.c.b16 %v436, %v435
    %v446 = vpack.c.b16 %v438, %v437
    %455 = vmatprep.subr.bf16.mxu0 0
    %456 = vmatpush1.bf16.msra.mxu0 %v446
    %457 = vmatprep.subr.bf16.mxu0 0
    %458 = vmatpush1.bf16.msra.mxu0 %v445
    %459 = vmatprep.subr.bf16.mxu0 0
    %460 = vmatpush1.bf16.msra.mxu0 %v444
    %461 = vmatprep.subr.bf16.mxu0 0
    %462 = vmatpush1.bf16.msra.mxu0 %v443
    %463 = vmatprep.subr.bf16.mxu0 0
    %464 = vmatpush1.bf16.msra.mxu0 %v442
    %465 = vmatprep.subr.bf16.mxu0 0
    %466 = vmatpush1.bf16.msra.mxu0 %v441
    %467 = vmatprep.subr.bf16.mxu0 0
    %468 = vmatpush1.bf16.msra.mxu0 %v440
    %469 = vmatprep.subr.bf16.mxu0 0
    %470 = vmatpush1.bf16.msra.mxu0 %v439
    %471 = vmatprep.subr.bf16.mxu0 0
    %472 = vmatpush2.bf16.msra.mxu0 0
    %473 = vmatprep.subr.bf16.mxu0 0
    %474 = vmatpush2.bf16.msra.mxu0 0
    %475 = vmatprep.subr.bf16.mxu0 0
    %476 = vmatpush2.bf16.msra.mxu0 0
    %477 = vmatprep.subr.bf16.mxu0 0
    %478 = vmatpush2.bf16.msra.mxu0 0
    %479 = vmatprep.subr.bf16.mxu0 0
    %480 = vmatpush2.bf16.msra.mxu0 0
    %481 = vmatprep.subr.bf16.mxu0 0
    %482 = vmatpush2.bf16.msra.mxu0 0
    %483 = vmatprep.subr.bf16.mxu0 0
    %484 = vmatpush2.bf16.msra.mxu0 0
    %485 = vmatprep.subr.bf16.mxu0 0
    %486 = vmatpush2.bf16.msra.mxu0 0
    %487 = vmatprep.mubr.bf16.mxu0 0
    %488 = vmatmul.mubr.bf16.gmra.mxu0 %v402
    %v489 = vpop.f32.mrf.mxu0
    %v490 = vadd.f32 %v406, %v489
    %v491 = vpop.f32.mrf.mxu0
    %v492 = vpop.f32.mrf.mxu0
    %v493 = vpop.f32.mrf.mxu0
    %494 = vdwg.mxu0
    %v495 = vmax.f32 %v490, 0.0
    %s496 = scalar_lea.vmem [#allocation2], 256
    %v497 = vld [vmem:[%s496] sm:$0xf]
    %v498 = vld [vmem:[%s496 + $0x4] sm:$0xf]
    %v499 = vld [vmem:[%s496 + $0x8] sm:$0xf]
    %v500 = vld [vmem:[%s496 + $0xc] sm:$0xf]
    %v501 = vld [vmem:[%s496 + $0x10] sm:$0xf]
    %v502 = vld [vmem:[%s496 + $0x14] sm:$0xf]
    %v503 = vld [vmem:[%s496 + $0x18] sm:$0xf]
    %v504 = vld [vmem:[%s496 + $0x1c] sm:$0xf]
    %v505 = vld [vmem:[%s496 + $0x20] sm:$0xf]
    %v506 = vld [vmem:[%s496 + $0x24] sm:$0xf]
    %v507 = vld [vmem:[%s496 + $0x28] sm:$0xf]
    %v508 = vld [vmem:[%s496 + $0x2c] sm:$0xf]
    %v509 = vld [vmem:[%s496 + $0x30] sm:$0xf]
    %v510 = vld [vmem:[%s496 + $0x34] sm:$0xf]
    %v511 = vld [vmem:[%s496 + $0x38] sm:$0xf]
    %v512 = vld [vmem:[%s496 + $0x3c] sm:$0xf]
    %s513 = scalar_lea.vmem [#allocation4], 32
    %v514 = vld [vmem:[%s513] sm:$0x1]
    %v515 = vpack.c.bf16 %v495, %v495
    %v516 = vlaneseq
    %v517 = vshrl.u32 %v516, 7
    %v518 = vsub.s32 0, %v517
    %v519 = vrot.slane %v514, %v518
    %v536 = vunpack.c.l.b16 %v497
    %v537 = vunpack.c.l.b16 %v498
    %v538 = vunpack.c.l.b16 %v499
    %v539 = vunpack.c.l.b16 %v500
    %v540 = vunpack.c.l.b16 %v501
    %v541 = vunpack.c.l.b16 %v502
    %v542 = vunpack.c.l.b16 %v503
    %v543 = vunpack.c.l.b16 %v504
    %v544 = vunpack.c.l.b16 %v505
    %v545 = vunpack.c.l.b16 %v506
    %v546 = vunpack.c.l.b16 %v507
    %v547 = vunpack.c.l.b16 %v508
    %v548 = vunpack.c.l.b16 %v509
    %v549 = vunpack.c.l.b16 %v510
    %v550 = vunpack.c.l.b16 %v511
    %v551 = vunpack.c.l.b16 %v512
    %v552 = vpack.c.b16 %v537, %v536
    %v553 = vpack.c.b16 %v539, %v538
    %v554 = vpack.c.b16 %v541, %v540
    %v555 = vpack.c.b16 %v543, %v542
    %v556 = vpack.c.b16 %v545, %v544
    %v557 = vpack.c.b16 %v547, %v546
    %v558 = vpack.c.b16 %v549, %v548
    %v559 = vpack.c.b16 %v551, %v550
    %568 = vmatprep.subr.bf16.mxu0 0
    %569 = vmatpush1.bf16.msra.mxu0 %v559
    %570 = vmatprep.subr.bf16.mxu0 0
    %571 = vmatpush1.bf16.msra.mxu0 %v558
    %572 = vmatprep.subr.bf16.mxu0 0
    %573 = vmatpush1.bf16.msra.mxu0 %v557
    %574 = vmatprep.subr.bf16.mxu0 0
    %575 = vmatpush1.bf16.msra.mxu0 %v556
    %576 = vmatprep.subr.bf16.mxu0 0
    %577 = vmatpush1.bf16.msra.mxu0 %v555
    %578 = vmatprep.subr.bf16.mxu0 0
    %579 = vmatpush1.bf16.msra.mxu0 %v554
    %580 = vmatprep.subr.bf16.mxu0 0
    %581 = vmatpush1.bf16.msra.mxu0 %v553
    %582 = vmatprep.subr.bf16.mxu0 0
    %583 = vmatpush1.bf16.msra.mxu0 %v552
    %584 = vmatprep.subr.bf16.mxu0 0
    %585 = vmatpush2.bf16.msra.mxu0 0
    %586 = vmatprep.subr.bf16.mxu0 0
    %587 = vmatpush2.bf16.msra.mxu0 0
    %588 = vmatprep.subr.bf16.mxu0 0
    %589 = vmatpush2.bf16.msra.mxu0 0
    %590 = vmatprep.subr.bf16.mxu0 0
    %591 = vmatpush2.bf16.msra.mxu0 0
    %592 = vmatprep.subr.bf16.mxu0 0
    %593 = vmatpush2.bf16.msra.mxu0 0
    %594 = vmatprep.subr.bf16.mxu0 0
    %595 = vmatpush2.bf16.msra.mxu0 0
    %596 = vmatprep.subr.bf16.mxu0 0
    %597 = vmatpush2.bf16.msra.mxu0 0
    %598 = vmatprep.subr.bf16.mxu0 0
    %599 = vmatpush2.bf16.msra.mxu0 0
    %600 = vmatprep.mubr.bf16.mxu0 0
    %601 = vmatmul.mubr.bf16.gmra.mxu0 %v515
    %v602 = vpop.f32.mrf.mxu0
    %v603 = vadd.f32 %v519, %v602
    %v604 = vpop.f32.mrf.mxu0
    %v605 = vpop.f32.mrf.mxu0
    %v606 = vpop.f32.mrf.mxu0
    %607 = vdwg.mxu0
    %v608 = vmax.f32 %v603, 0.0
    %s609 = scalar_lea.vmem [#allocation2], 320
    %v610 = vld [vmem:[%s609] sm:$0xf]
    %v611 = vld [vmem:[%s609 + $0x4] sm:$0xf]
    %v612 = vld [vmem:[%s609 + $0x8] sm:$0xf]
    %v613 = vld [vmem:[%s609 + $0xc] sm:$0xf]
    %v614 = vld [vmem:[%s609 + $0x10] sm:$0xf]
    %v615 = vld [vmem:[%s609 + $0x14] sm:$0xf]
    %v616 = vld [vmem:[%s609 + $0x18] sm:$0xf]
    %v617 = vld [vmem:[%s609 + $0x1c] sm:$0xf]
    %v618 = vld [vmem:[%s609 + $0x20] sm:$0xf]
    %v619 = vld [vmem:[%s609 + $0x24] sm:$0xf]
    %v620 = vld [vmem:[%s609 + $0x28] sm:$0xf]
    %v621 = vld [vmem:[%s609 + $0x2c] sm:$0xf]
    %v622 = vld [vmem:[%s609 + $0x30] sm:$0xf]
    %v623 = vld [vmem:[%s609 + $0x34] sm:$0xf]
    %v624 = vld [vmem:[%s609 + $0x38] sm:$0xf]
    %v625 = vld [vmem:[%s609 + $0x3c] sm:$0xf]
    %s626 = scalar_lea.vmem [#allocation4], 40
    %v627 = vld [vmem:[%s626] sm:$0x1]
    %v628 = vpack.c.bf16 %v608, %v608
    %v629 = vlaneseq
    %v630 = vshrl.u32 %v629, 7
    %v631 = vsub.s32 0, %v630
    %v632 = vrot.slane %v627, %v631
    %v649 = vunpack.c.l.b16 %v610
    %v650 = vunpack.c.l.b16 %v611
    %v651 = vunpack.c.l.b16 %v612
    %v652 = vunpack.c.l.b16 %v613
    %v653 = vunpack.c.l.b16 %v614
    %v654 = vunpack.c.l.b16 %v615
    %v655 = vunpack.c.l.b16 %v616
    %v656 = vunpack.c.l.b16 %v617
    %v657 = vunpack.c.l.b16 %v618
    %v658 = vunpack.c.l.b16 %v619
    %v659 = vunpack.c.l.b16 %v620
    %v660 = vunpack.c.l.b16 %v621
    %v661 = vunpack.c.l.b16 %v622
    %v662 = vunpack.c.l.b16 %v623
    %v663 = vunpack.c.l.b16 %v624
    %v664 = vunpack.c.l.b16 %v625
    %v665 = vpack.c.b16 %v650, %v649
    %v666 = vpack.c.b16 %v652, %v651
    %v667 = vpack.c.b16 %v654, %v653
    %v668 = vpack.c.b16 %v656, %v655
    %v669 = vpack.c.b16 %v658, %v657
    %v670 = vpack.c.b16 %v660, %v659
    %v671 = vpack.c.b16 %v662, %v661
    %v672 = vpack.c.b16 %v664, %v663
    %681 = vmatprep.subr.bf16.mxu0 0
    %682 = vmatpush1.bf16.msra.mxu0 %v672
    %683 = vmatprep.subr.bf16.mxu0 0
    %684 = vmatpush1.bf16.msra.mxu0 %v671
    %685 = vmatprep.subr.bf16.mxu0 0
    %686 = vmatpush1.bf16.msra.mxu0 %v670
    %687 = vmatprep.subr.bf16.mxu0 0
    %688 = vmatpush1.bf16.msra.mxu0 %v669
    %689 = vmatprep.subr.bf16.mxu0 0
    %690 = vmatpush1.bf16.msra.mxu0 %v668
    %691 = vmatprep.subr.bf16.mxu0 0
    %692 = vmatpush1.bf16.msra.mxu0 %v667
    %693 = vmatprep.subr.bf16.mxu0 0
    %694 = vmatpush1.bf16.msra.mxu0 %v666
    %695 = vmatprep.subr.bf16.mxu0 0
    %696 = vmatpush1.bf16.msra.mxu0 %v665
    %697 = vmatprep.subr.bf16.mxu0 0
    %698 = vmatpush2.bf16.msra.mxu0 0
    %699 = vmatprep.subr.bf16.mxu0 0
    %700 = vmatpush2.bf16.msra.mxu0 0
    %701 = vmatprep.subr.bf16.mxu0 0
    %702 = vmatpush2.bf16.msra.mxu0 0
    %703 = vmatprep.subr.bf16.mxu0 0
    %704 = vmatpush2.bf16.msra.mxu0 0
    %705 = vmatprep.subr.bf16.mxu0 0
    %706 = vmatpush2.bf16.msra.mxu0 0
    %707 = vmatprep.subr.bf16.mxu0 0
    %708 = vmatpush2.bf16.msra.mxu0 0
    %709 = vmatprep.subr.bf16.mxu0 0
    %710 = vmatpush2.bf16.msra.mxu0 0
    %711 = vmatprep.subr.bf16.mxu0 0
    %712 = vmatpush2.bf16.msra.mxu0 0
    %713 = vmatprep.mubr.bf16.mxu0 0
    %714 = vmatmul.mubr.bf16.gmra.mxu0 %v628
    %v715 = vpop.f32.mrf.mxu0
    %v716 = vadd.f32 %v632, %v715
    %v717 = vpop.f32.mrf.mxu0
    %v718 = vpop.f32.mrf.mxu0
    %v719 = vpop.f32.mrf.mxu0
    %720 = vdwg.mxu0
    %721 = vst.msk [vmem:[%s3] sm:$0xff] %vm44, %v716
    // Predicated region
    $region22: #{odefunc_forward.1} parent=1 // pred_check
      _
    $region23: #{odefunc_forward.1} parent=1 // pred_check_branch
      %723 = sbr.rel (0) target = $region25
    $region24: #{odefunc_forward.1} parent=1 // pred_region
      _
    $region25: #{odefunc_forward.1} parent=1 // pred_fallthru
      _
    // Predicated region
    $region26: #{odefunc_forward.1} parent=1 // pred_check
      _
    $region27: #{odefunc_forward.1} parent=1 // pred_check_branch
      %725 = sbr.rel (0) target = $region29
    $region28: #{odefunc_forward.1} parent=1 // pred_region
      _
    $region29: #{odefunc_forward.1} parent=1 // pred_fallthru
      _
    %726 = vsyncpa [#allocation3], 1
    %727 = vsyncpa [#allocation5], 1

</llo_original>
